<compile_context>
chip_gen: v7x
topology: tpu7x:2x2x1
jax: 0.10.0
libtpu: 0.0.40
codegen_flags: <defaults>
</compile_context>

<pallas_src>
import jax
import jax.numpy as jnp
from jax.experimental import pallas as pl
from jax.experimental.pallas import tpu as pltpu


_LANE = 512                              # lane-dense slab width (multiple of 128)
_ROW_TILE = 512                          # rows per block in tiled path -> 1 MiB f32 blocks
_STRIP = 16                              # sublane strip for min/max accumulation
_FUSED_MAX_F32_BYTES = 4 * 1024 * 1024   # fuse both passes below this f32 slab size


# ---------------------------------------------------------------------------
# Fused kernel: whole (small) slab is one VMEM block; reduce + normalize in one
# pass (1 HBM read + 1 HBM write total).
# ---------------------------------------------------------------------------
def _fused_kernel(x_ref, o_ref):
    xf = x_ref[...].astype(jnp.float32)
    mn = jnp.min(xf)
    mx = jnp.max(xf)
    scale = 2.0 / (mx - mn)
    bias = -mn * scale - 1.0
    o_ref[...] = (xf * scale + bias).astype(o_ref.dtype)


# ---------------------------------------------------------------------------
# Pass 1 (tiled path): global min/max reduction.
# Per grid step: elementwise min/max of 16-row strips into a (16, LANE) VMEM
# accumulator (VPU-only, co-issues with the DMA).  Only on the LAST step do we
# collapse to scalars and emit scale/bias to (1,1) SMEM outputs.
# ---------------------------------------------------------------------------
def _minmax_kernel(x_ref, scale_ref, bias_ref, mn_acc, mx_acc):
    i = pl.program_id(0)
    tr = x_ref.shape[0]

    first = x_ref[0:_STRIP, :].astype(jnp.float32)
    tile_mn = first
    tile_mx = first
    for s in range(1, tr // _STRIP):
        blk = x_ref[s * _STRIP:(s + 1) * _STRIP, :].astype(jnp.float32)
        tile_mn = jnp.minimum(tile_mn, blk)
        tile_mx = jnp.maximum(tile_mx, blk)

    @pl.when(i == 0)
    def _():
        mn_acc[...] = tile_mn
        mx_acc[...] = tile_mx

    @pl.when(i > 0)
    def _():
        mn_acc[...] = jnp.minimum(mn_acc[...], tile_mn)
        mx_acc[...] = jnp.maximum(mx_acc[...], tile_mx)

    @pl.when(i == pl.num_programs(0) - 1)
    def _():
        mn = jnp.min(mn_acc[...])
        mx = jnp.max(mx_acc[...])
        scale = 2.0 / (mx - mn)
        scale_ref[0, 0] = scale
        bias_ref[0, 0] = -mn * scale - 1.0


# ---------------------------------------------------------------------------
# Pass 2 (tiled path): y = x * scale + bias (single multiply-add per element,
# in-kernel up/down casts, lane-dense 1 MiB blocks).
# ---------------------------------------------------------------------------
def _normalize_kernel(scale_ref, bias_ref, x_ref, o_ref):
    scale = scale_ref[0, 0]
    bias = bias_ref[0, 0]
    o_ref[...] = (x_ref[...].astype(jnp.float32) * scale + bias).astype(o_ref.dtype)


def _pallas_normalize_2d(x2, out_dtype, tile_rows, fused):
    r, lane = x2.shape

    if fused:
        return pl.pallas_call(
            _fused_kernel,
            out_shape=jax.ShapeDtypeStruct((r, lane), out_dtype),
            compiler_params=pltpu.CompilerParams(
                vmem_limit_bytes=32 * 1024 * 1024,
            ),
        )(x2)

    grid = (r // tile_rows,)

    # ----- pass 1: global min/max -> scale/bias scalars -----
    scale_val, bias_val = pl.pallas_call(
        _minmax_kernel,
        out_shape=(
            jax.ShapeDtypeStruct((1, 1), jnp.float32),
            jax.ShapeDtypeStruct((1, 1), jnp.float32),
        ),
        grid_spec=pltpu.PrefetchScalarGridSpec(
            num_scalar_prefetch=0,
            grid=grid,
            in_specs=[pl.BlockSpec((tile_rows, lane), lambda i: (i, 0))],
            out_specs=(
                pl.BlockSpec((1, 1), lambda i: (0, 0), memory_space=pltpu.SMEM),
                pl.BlockSpec((1, 1), lambda i: (0, 0), memory_space=pltpu.SMEM),
            ),
            scratch_shapes=[
                pltpu.VMEM((_STRIP, lane), jnp.float32),
                pltpu.VMEM((_STRIP, lane), jnp.float32),
            ],
        ),
        compiler_params=pltpu.CompilerParams(
            dimension_semantics=("arbitrary",),
        ),
    )(x2)

    # ----- pass 2: elementwise normalization (parallel grid axis) -----
    y2 = pl.pallas_call(
        _normalize_kernel,
        out_shape=jax.ShapeDtypeStruct((r, lane), out_dtype),
        grid_spec=pltpu.PrefetchScalarGridSpec(
            num_scalar_prefetch=0,
            grid=grid,
            in_specs=[
                pl.BlockSpec((1, 1), lambda i: (0, 0), memory_space=pltpu.SMEM),
                pl.BlockSpec((1, 1), lambda i: (0, 0), memory_space=pltpu.SMEM),
                pl.BlockSpec((tile_rows, lane), lambda i: (i, 0)),
            ],
            out_specs=pl.BlockSpec((tile_rows, lane), lambda i: (i, 0)),
        ),
        compiler_params=pltpu.CompilerParams(
            dimension_semantics=("parallel",),
        ),
    )(scale_val, bias_val, x2)

    return y2


@jax.jit
def normalize_min_max(img: jax.Array) -> jax.Array:
    """Pallas TPU implementation of NormalizeMinMax.forward for tensor inputs."""
    orig_shape = img.shape
    orig_dtype = img.dtype

    if orig_dtype in (jnp.float32, jnp.bfloat16):
        x = img                              # casts happen inside the kernels
        kernel_out_dtype = orig_dtype
    else:
        # TODO(synk): int / f16 / f64 inputs fall back to a wrapper-side f32 cast
        # (one extra HBM round trip); rare for image tensors.
        x = img.astype(jnp.float32)
        kernel_out_dtype = jnp.float32

    final_dtype = (
        orig_dtype if jnp.issubdtype(orig_dtype, jnp.floating) else jnp.float32
    )

    n = x.size
    x1 = x.reshape(-1)

    rows = -(-n // _LANE)                    # ceil(n / LANE)
    f32_bytes = rows * _LANE * 4
    if f32_bytes <= _FUSED_MAX_F32_BYTES:
        fused = True
        tile_rows = rows
        r = rows
    else:
        fused = False
        tile_rows = _ROW_TILE
        r = -(-rows // tile_rows) * tile_rows  # pad rows up to a tile multiple

    total = r * _LANE
    if total != n:
        # Edge-pad with an existing element so global min/max are unchanged.
        x1 = jnp.pad(x1, (0, total - n), mode="edge")
    x2 = x1.reshape(r, _LANE)

    y2 = _pallas_normalize_2d(x2, kernel_out_dtype, tile_rows, fused)

    y1 = y2.reshape(-1)
    if total != n:
        y1 = y1[:n]
    return y1.reshape(orig_shape).astype(final_dtype)


if __name__ == "__main__":
    k0, k1, k2 = jax.random.split(jax.random.PRNGKey(0), 3)

    # 1) Primary demo input (NCHW image-like) -> fused single-kernel path.
    x = jax.random.normal(k0, (2, 4, 16, 16), dtype=jnp.float32) * 3.0 + 1.5
    y = jax.block_until_ready(normalize_min_max(x))
    mn, mx = jnp.min(x), jnp.max(x)
    y_ref = ((x - mn) / (mx - mn)) * 2.0 - 1.0
    assert y.shape == x.shape and y.dtype == x.dtype
    assert jnp.allclose(y, y_ref, atol=1e-5, rtol=1e-5), "fused path mismatch"
    assert jnp.isclose(jnp.min(y), -1.0, atol=1e-5)
    assert jnp.isclose(jnp.max(y), 1.0, atol=1e-5)

    # 2) Larger input -> exercises the tiled two-pass (reduce + normalize) path.
    xb = jax.random.normal(k1, (4, 4, 512, 640), dtype=jnp.float32) * 2.0 - 0.3
    yb = jax.block_until_ready(normalize_min_max(xb))
    mnb, mxb = jnp.min(xb), jnp.max(xb)
    yb_ref = ((xb - mnb) / (mxb - mnb)) * 2.0 - 1.0
    assert yb.shape == xb.shape and yb.dtype == xb.dtype
    assert jnp.allclose(yb, yb_ref, atol=1e-5, rtol=1e-5), "tiled path mismatch"

    # 3) bf16 input with an awkward shape -> in-kernel casts + edge padding.
    xh = (jax.random.normal(k2, (3, 5, 17, 19), dtype=jnp.float32) * 4.0).astype(
        jnp.bfloat16
    )
    yh = jax.block_until_ready(normalize_min_max(xh))
    xh32 = xh.astype(jnp.float32)
    mnh, mxh = jnp.min(xh32), jnp.max(xh32)
    yh_ref = ((xh32 - mnh) / (mxh - mnh)) * 2.0 - 1.0
    assert yh.shape == xh.shape and yh.dtype == jnp.bfloat16
    assert jnp.allclose(yh.astype(jnp.float32), yh_ref, atol=1.5e-2, rtol=0.0), (
        "bf16 path mismatch"
    )

    print("KERNEL_OK")
</pallas_src>

<mosaic_0001>
module attributes {stable_mosaic.version = 11 : i64} {
  func.func @_fused_kernel(%arg0: memref<4x512xf32, #tpu.memory_space<vmem>>, %arg1: memref<4x512xf32, #tpu.memory_space<vmem>>) attributes {dimension_semantics = [], scalar_prefetch = 0 : i64, scratch_operands = 0 : i64, tpu.core_type = #tpu.core_type<tc>} {
    %c0 = arith.constant 0 : index
    %c0_0 = arith.constant 0 : index
    %0 = vector.load %arg0[%c0, %c0_0] : memref<4x512xf32, #tpu.memory_space<vmem>>, vector<4x512xf32>
    %1 = vector.shape_cast %0 : vector<4x512xf32> to vector<1x4x512xf32>
    %cst = arith.constant dense<0x7F800000> : vector<1xf32>
    %2 = vector.multi_reduction <minimumf>, %1, %cst [1, 2] : vector<1x4x512xf32> to vector<1xf32>
    %3 = vector.shape_cast %2 : vector<1xf32> to vector<1x1x1xf32>
    %4 = vector.extract %3[0, 0, 0] : f32 from vector<1x1x1xf32>
    %5 = vector.shape_cast %0 : vector<4x512xf32> to vector<1x4x512xf32>
    %cst_1 = arith.constant dense<0xFF800000> : vector<1xf32>
    %6 = vector.multi_reduction <maximumf>, %5, %cst_1 [1, 2] : vector<1x4x512xf32> to vector<1xf32>
    %7 = vector.shape_cast %6 : vector<1xf32> to vector<1x1x1xf32>
    %8 = vector.extract %7[0, 0, 0] : f32 from vector<1x1x1xf32>
    %9 = arith.subf %8, %4 : f32
    %cst_2 = arith.constant 2.000000e+00 : f32
    %10 = arith.divf %cst_2, %9 : f32
    %cst_3 = arith.constant 0.000000e+00 : f32
    %11 = arith.subf %cst_3, %4 : f32
    %12 = arith.mulf %11, %10 : f32
    %cst_4 = arith.constant 1.000000e+00 : f32
    %13 = arith.subf %12, %cst_4 : f32
    %14 = vector.broadcast %10 : f32 to vector<4x512xf32>
    %15 = arith.mulf %0, %14 : vector<4x512xf32>
    %16 = vector.broadcast %13 : f32 to vector<4x512xf32>
    %17 = arith.addf %15, %16 : vector<4x512xf32>
    %c0_5 = arith.constant 0 : index
    %c0_6 = arith.constant 0 : index
    %18 = vector.load %arg1[%c0_5, %c0_6] : memref<4x512xf32, #tpu.memory_space<vmem>>, vector<4x512xf32>
    tpu.vector_store %arg1[%c0_5, %c0_6], %17 {strides = array<i32>} : memref<4x512xf32, #tpu.memory_space<vmem>>, vector<4x512xf32>,
    return
  }
}

</mosaic_0001>

<llo_original>
// kernel: normalize_min_max.1
$region0: #{normalize_min_max.1}
  #allocation0 [shape = 'u32[]', space=smem, size = 0x4, offset = 0x4, fixed_abs, tag = 'smem constant byte address 0x4 - core index']
  #allocation1 [shape = 'u32[144,128]{1,0:T(1,128)}', space=vmem, size = 0x12000, scoped, tag = 'internal scratch']
  %s0 = inlined_call_operand.vmem [shape: f32[4,512], index: 0, kind: input, shape index: {}]
  %s1 = inlined_call_operand.vmem [shape: f32[4,512], index: 1, kind: output, shape index: {}]
  %s2 = sld [smem:[#allocation0]]
  $region14: #{normalize_min_max.1} parent=0
    _
  %s4 = ssub.s32 1, %s2
  %s5 = scalar_select 0, %s4, %s2
  // Predicated region
  $region2: #{normalize_min_max.1} parent=0 // pred_check
    _
  $region3: #{normalize_min_max.1} parent=0 // pred_check_branch
    %7 = sbr.rel (0) target = $region5
  $region4: #{normalize_min_max.1} parent=0 // pred_region
    _
  $region5: #{normalize_min_max.1} parent=0 // pred_fallthru
    _
  %v8 = vld [vmem:[%s0] sm:$0xff]
  %v9 = vld [vmem:[%s0 + $0x8] sm:$0xff]
  %v12 = vcombine.high %v8, %v8
  %v13 = vcombine.high %v9, %v9
  %vm16 = vcmask 1043456
  %v17 = vsel %vm16, %v8, inf
  %v18 = vsel %vm16, %v12, inf
  %v19 = vsel %vm16, %v9, inf
  %v20 = vsel %vm16, %v13, inf
  %v21 = vmin.f32 %v17, %v18
  %v22 = vmin.f32 %v19, %v20
  %v23 = vmin.f32 %v21, %v22
  %24 = vmin.xlane.f32.xlu0 %v23
  %v25 = vpop.xlane.xlu0 %24
  %v26 = vrot.slane %v25, 4
  %v27 = vmin.f32 %v25, %v26
  %v28 = vrot.slane %v27, 2
  %v29 = vmin.f32 %v27, %v28
  %v30 = vrot.slane %v29, 1
  %v31 = vmin.f32 %v29, %v30
  %s32 = vtos %v31
  %v33 = vsel %vm16, %v8, -inf
  %v34 = vsel %vm16, %v12, -inf
  %v35 = vsel %vm16, %v9, -inf
  %v36 = vsel %vm16, %v13, -inf
  %v37 = vmax.f32 %v33, %v34
  %v38 = vmax.f32 %v35, %v36
  %v39 = vmax.f32 %v37, %v38
  %40 = vmax.xlane.f32.xlu0 %v39
  %v41 = vpop.xlane.xlu0 %40
  %v42 = vrot.slane %v41, 4
  %v43 = vmax.f32 %v41, %v42
  %v44 = vrot.slane %v43, 2
  %v45 = vmax.f32 %v43, %v44
  %v46 = vrot.slane %v45, 1
  %v47 = vmax.f32 %v45, %v46
  %s48 = vtos %v47
  %s49 = ssub.f32 %s48, %s32
  %v50 = vstv %s49
  %v51 = vrcp.pop %v50
  %s52 = vtos %v51
  %s53 = smul.f32 2.0, %s52
  %s54 = ssub.f32 0.0, %s32
  %s55 = smul.f32 %s54, %s53
  %s56 = ssub.f32 %s55, 1.0
  %v57 = vstv %s53
  %v58 = vmul.f32 %v8, %v57
  %v59 = vmul.f32 %v9, %v57
  %v60 = vstv %s56
  %v61 = vadd.f32 %v58, %v60
  %v62 = vadd.f32 %v59, %v60
  %63 = vst [vmem:[%s1] sm:$0xff] %v61
  %64 = vst [vmem:[%s1 + $0x8] sm:$0xff] %v62
  // Predicated region
  $region6: #{normalize_min_max.1} parent=0 // pred_check
    _
  $region7: #{normalize_min_max.1} parent=0 // pred_check_branch
    %66 = sbr.rel (0) target = $region9
  $region8: #{normalize_min_max.1} parent=0 // pred_region
    _
  $region9: #{normalize_min_max.1} parent=0 // pred_fallthru
    _
  // Predicated region
  $region10: #{normalize_min_max.1} parent=0 // pred_check
    _
  $region11: #{normalize_min_max.1} parent=0 // pred_check_branch
    %68 = sbr.rel (0) target = $region13
  $region12: #{normalize_min_max.1} parent=0 // pred_region
    _
  $region13: #{normalize_min_max.1} parent=0 // pred_fallthru
    _

</llo_original>
